<compile_context>
chip_gen: v6e
topology: v6e:2x2x1
jax: 0.10.0
libtpu: 0.0.40
codegen_flags: <defaults>
</compile_context>

<pallas_src>
import functools
import math

import numpy as np
import jax
import jax.numpy as jnp
from jax import lax
from jax.experimental import pallas as pl
from jax.experimental.pallas import tpu as pltpu


# ----------------------------------------------------------------------------
# Glue: dictionary construction (parameter setup, plain JAX)
# ----------------------------------------------------------------------------
def real_D(T, rho, theta, rmin, rmax, tmin, tmax):
    """JAX port of real_D (CONSTR=True, NORM=False)."""
    # TODO(synk): num2rt_clamp / rt2num_clamp are not provided in the reference
    # source; a plain range clamp is used as the constraint parameterization.
    rho_c = jnp.clip(rho, rmin, rmax)
    theta_c = jnp.clip(theta, tmin, tmax)
    i = jnp.arange(T, dtype=jnp.float32)[:, None]                      # (T, 1)
    W1 = jnp.power(rho_c[None, :], i) * jnp.cos(i * theta_c[None, :])  # (T, N)
    W2 = jnp.power(rho_c[None, :], i) * jnp.sin(i * theta_c[None, :])  # (T, N)
    ones = jnp.ones((T, 1), jnp.float32)
    return jnp.concatenate([ones, W1, W2], axis=1)                     # (T, 2N+1)


# ----------------------------------------------------------------------------
# Pallas kernel: FISTA iterations + reconstruction (the hot path)
# ----------------------------------------------------------------------------
def bisc_fista_kernel(scal_ref, tt_ref, dt_ref, d_ref, a_ref, y_ref,
                      c_ref, r_ref, *, n_chunks, chunk):
    thresh = scal_ref[0]          # lam_f * Linv (softshrink threshold)
    conv2 = scal_ref[1]           # (1e-5 * dim)^2 / n_col_tiles

    Dt = dt_ref[...]              # (Np_pad, T), pre-scaled by Linv in the wrapper
    D = d_ref[...]                # (T, Np_pad)
    A = a_ref[...]                # (Np_pad, Np_pad) = I - Linv * D^T D (zero-padded)
    Y = y_ref[...]                # (T, TILE_N) column tile

    # Bc = Linv * D^T @ Y  (Linv folded into Dt; one MXU pass outside the loop)
    Bc = jnp.dot(Dt, Y, preferred_element_type=jnp.float32)    # (Np_pad, TILE_N)
    zeros = jnp.zeros_like(Bc)

    def fista_step(x, y, k):
        z = jnp.dot(A, y, preferred_element_type=jnp.float32) + Bc
        # Softshrink(thresh) as two maxes (fewer VALU ops than sign*max(|z|-t,0))
        x_new = jnp.maximum(z - thresh, 0.0) - jnp.maximum(-z - thresh, 0.0)
        # momentum coefficient depends only on the iteration index -> SMEM table
        y_new = x_new + tt_ref[k] * (x_new - x)
        return x_new, y_new

    def cond(carry):
        _, _, c, conv = carry
        return jnp.logical_and(c < n_chunks, jnp.logical_not(conv))

    def body(carry):
        x, y, c, _ = carry
        k0 = c * chunk
        # chunk-1 steps with no cross-lane reduction in the dependency chain
        for i in range(chunk - 1):
            x, y = fista_step(x, y, k0 + i)
        # last step of the chunk: evaluate the convergence criterion once,
        # amortizing the XLU reduce -> scalar -> branch serialization.
        x_prev = x
        x, y = fista_step(x, y, k0 + chunk - 1)
        diff2 = jnp.sum((x_prev - x) ** 2)
        # torch semantics: return x_new when the per-step change is below
        # threshold; here the check runs every `chunk` iterations (at most
        # chunk-1 extra, strictly-more-converged FISTA steps).
        return x, y, c + 1, diff2 < conv2

    x, _, _, _ = lax.while_loop(
        cond, body, (zeros, zeros, jnp.int32(0), jnp.array(False)))

    c_ref[...] = x                                                      # C
    r_ref[...] = jnp.dot(D, x, preferred_element_type=jnp.float32)      # R = D @ C
    # wiBI = False => B = ones, R_B = D @ (C*B) = R; handled in the wrapper.


# ----------------------------------------------------------------------------
# Wrapper: BiSC.forward
# ----------------------------------------------------------------------------
def bisc_forward(x, rho, theta, *, lam_f, rmin, rmax, tmin, tmax,
                 max_iter=100, chunk=4, col_tile=512):
    x = x.astype(jnp.float32)
    Ns, T, dim = x.shape
    Nd = Ns * dim

    # dictionary + FISTA constants (glue, plain JAX)
    D = real_D(T, rho, theta, rmin, rmax, tmin, tmax)                  # (T, Np)
    Np = D.shape[1]
    DtD = D.T @ D
    Linv = 1.0 / jnp.linalg.norm(DtD, ord=2)                           # spectral norm
    A = jnp.eye(Np, dtype=jnp.float32) - Linv * DtD

    # pole axis padded to a multiple of 8 (sublanes); column axis padded to a
    # multiple of the lane-dense tile. Zero-padded poles/columns produce exactly
    # zero codes through FISTA, so results are unchanged; sliced away below.
    Np_pad = ((Np + 7) // 8) * 8
    tile_n = min(((Nd + 127) // 128) * 128, col_tile)                  # multiple of 128
    Nd_pad = ((Nd + tile_n - 1) // tile_n) * tile_n
    n_tiles = Nd_pad // tile_n

    D_pad = jnp.pad(D, ((0, 0), (0, Np_pad - Np)))                     # (T, Np_pad)
    A_pad = jnp.pad(A, ((0, Np_pad - Np), (0, Np_pad - Np)))           # (Np_pad, Np_pad)
    Dt_scaled = (D_pad * Linv).T                                       # Linv folded in

    # column-stacked layout, padded on columns
    Y2 = jnp.transpose(x, (1, 0, 2)).reshape(T, Nd)
    Y2 = jnp.pad(Y2, ((0, 0), (0, Nd_pad - Nd)))                       # (T, Nd_pad)

    # scalar constants for SMEM: [thresh, conv2]; the convergence budget is
    # split across column tiles (conservative: per-tile check is stricter).
    conv2 = np.float32((1e-5 * dim) ** 2 / n_tiles)
    scal = jnp.stack([jnp.float32(lam_f) * Linv,
                      jnp.asarray(conv2)]).astype(jnp.float32)

    # trace-time FISTA momentum coefficients tt_k (depend only on iter index);
    # table covers n_chunks*chunk >= max_iter iterations.
    n_chunks = (max_iter + chunk - 1) // chunk
    t = 1.0
    tts = []
    for _ in range(n_chunks * chunk):
        t_new = (1.0 + math.sqrt(1.0 + 4.0 * t * t)) / 2.0
        tts.append((t - 1.0) / t_new)
        t = t_new
    tt_arr = jnp.asarray(np.asarray(tts, dtype=np.float32))

    kernel = functools.partial(bisc_fista_kernel, n_chunks=n_chunks, chunk=chunk)

    smem = pl.BlockSpec(memory_space=pltpu.MemorySpace.SMEM)

    c2, r2 = pl.pallas_call(
        kernel,
        out_shape=(
            jax.ShapeDtypeStruct((Np_pad, Nd_pad), jnp.float32),       # C2 (padded)
            jax.ShapeDtypeStruct((T, Nd_pad), jnp.float32),            # R2 (padded)
        ),
        grid=(n_tiles,),
        in_specs=[
            smem,                                           # [thresh, conv2]
            smem,                                           # tt_k table
            pl.BlockSpec((Np_pad, T), lambda j: (0, 0)),    # Linv * D^T (constant block)
            pl.BlockSpec((T, Np_pad), lambda j: (0, 0)),    # D          (constant block)
            pl.BlockSpec((Np_pad, Np_pad), lambda j: (0, 0)),  # A       (constant block)
            pl.BlockSpec((T, tile_n), lambda j: (0, j)),    # Y2 column tile
        ],
        out_specs=(
            pl.BlockSpec((Np_pad, tile_n), lambda j: (0, j)),
            pl.BlockSpec((T, tile_n), lambda j: (0, j)),
        ),
        compiler_params=pltpu.CompilerParams(
            dimension_semantics=("parallel",),              # megacore on v7x
            vmem_limit_bytes=48 * 1024 * 1024),             # headroom on all gens
    )(scal, tt_arr, Dt_scaled, D_pad, A_pad, Y2)

    # back to PyTorch conventions (slice away padding)
    C = c2[:Np, :Nd].reshape(Np, Ns, dim).transpose(1, 0, 2)     # (Ns, Np, dim)
    R = r2[:, :Nd].reshape(T, Ns, dim).transpose(1, 0, 2)        # (Ns, T,  dim)
    B = jnp.ones_like(C)                                         # wiBI = False
    R_B = R                                                      # B == 1 => R_B == R
    return C, R, B, R_B


# ----------------------------------------------------------------------------
# Pure-JAX reference (mirrors the torch fista / BiSC.forward semantics)
# ----------------------------------------------------------------------------
def bisc_ref(x, rho, theta, *, lam_f, rmin, rmax, tmin, tmax, max_iter=100):
    x = x.astype(jnp.float32)
    Ns, T, dim = x.shape
    D = real_D(T, rho, theta, rmin, rmax, tmin, tmax)
    DtD = D.T @ D
    Linv = 1.0 / jnp.linalg.norm(DtD, ord=2)
    Np = DtD.shape[1]
    A = jnp.eye(Np, dtype=jnp.float32) - Linv * DtD
    Bc = Linv * jnp.einsum('tp,ntd->npd', D, x)
    thresh = lam_f * Linv

    X = jnp.zeros((Ns, Np, dim), jnp.float32)
    Y = jnp.zeros_like(X)
    t = 1.0
    for _ in range(max_iter):
        z = jnp.einsum('pq,nqd->npd', A, Y) + Bc
        x_new = jnp.sign(z) * jnp.maximum(jnp.abs(z) - thresh, 0.0)
        if float(jnp.linalg.norm(X - x_new)) / dim < 1e-5:
            X = x_new
            break
        t_new = (1.0 + math.sqrt(1.0 + 4.0 * t * t)) / 2.0
        tt = (t - 1.0) / t_new
        Y = (1.0 + tt) * x_new - tt * X
        X = x_new
        t = t_new
    C = X
    R = jnp.einsum('tp,npd->ntd', D, C)
    B = jnp.ones_like(C)
    R_B = jnp.einsum('tp,npd->ntd', D, C * B)
    return C, R, B, R_B


# ----------------------------------------------------------------------------
if __name__ == "__main__":
    # args: N=8 poles -> Np = 2N+1 = 17, T=8, lam_f=0.1,
    #       r_r="0.8,1.1", r_t="0.001,pi", wiRH=False, wiBI=False
    N, T, lam_f = 8, 8, 0.1
    rmin, rmax = 0.8, 1.1
    tmin, tmax = 0.001, math.pi
    Ns, dim = 2, 50                      # (batch*clips, num_joints*dim_joints)

    key = jax.random.PRNGKey(0)
    k_rho, k_theta, k_x = jax.random.split(key, 3)
    # deterministic DYAN pole parameters (rt2num_clamp treated as identity)
    rho = jax.random.uniform(k_rho, (N,), jnp.float32, rmin, rmax)
    theta = jax.random.uniform(k_theta, (N,), jnp.float32, tmin, tmax)

    x = jax.random.normal(k_x, (Ns, T, dim), jnp.float32)

    C, R, B, R_B = bisc_forward(x, rho, theta, lam_f=lam_f,
                                rmin=rmin, rmax=rmax, tmin=tmin, tmax=tmax)
    jax.block_until_ready((C, R, B, R_B))

    C_r, R_r, B_r, RB_r = bisc_ref(x, rho, theta, lam_f=lam_f,
                                   rmin=rmin, rmax=rmax, tmin=tmin, tmax=tmax)

    np.testing.assert_allclose(np.asarray(C), np.asarray(C_r), rtol=2e-2, atol=2e-2)
    np.testing.assert_allclose(np.asarray(R), np.asarray(R_r), rtol=2e-2, atol=2e-2)
    np.testing.assert_allclose(np.asarray(B), np.asarray(B_r), rtol=0, atol=0)
    np.testing.assert_allclose(np.asarray(R_B), np.asarray(RB_r), rtol=2e-2, atol=2e-2)

    print("KERNEL_OK")
</pallas_src>

<mosaic_0001>
module attributes {stable_mosaic.version = 11 : i64} {
  func.func @bisc_fista_kernel(%arg0: i32, %arg1: memref<2xf32, #tpu.memory_space<smem>>, %arg2: memref<100xf32, #tpu.memory_space<smem>>, %arg3: memref<24x8xf32, #tpu.memory_space<vmem>>, %arg4: memref<8x24xf32, #tpu.memory_space<vmem>>, %arg5: memref<24x24xf32, #tpu.memory_space<vmem>>, %arg6: memref<8x128xf32, #tpu.memory_space<vmem>>, %arg7: memref<24x128xf32, #tpu.memory_space<vmem>>, %arg8: memref<8x128xf32, #tpu.memory_space<vmem>>) attributes {dimension_semantics = [#tpu.dimension_semantics<parallel>], iteration_bounds = array<i64: 1>, scalar_prefetch = 0 : i64, scratch_operands = 0 : i64, tpu.core_type = #tpu.core_type<tc>, window_params = [{transform_indices = @transform_0, window_bounds = array<i64: 2>}, {transform_indices = @transform_1, window_bounds = array<i64: 100>}, {pipeline_mode = #tpu.pipeline_mode<synchronous>, transform_indices = @transform_2, window_bounds = array<i64: 24, 8>}, {pipeline_mode = #tpu.pipeline_mode<synchronous>, transform_indices = @transform_3, window_bounds = array<i64: 8, 24>}, {pipeline_mode = #tpu.pipeline_mode<synchronous>, transform_indices = @transform_4, window_bounds = array<i64: 24, 24>}, {transform_indices = @transform_5, window_bounds = array<i64: 8, 128>}, {transform_indices = @transform_6, window_bounds = array<i64: 24, 128>}, {transform_indices = @transform_7, window_bounds = array<i64: 8, 128>}]} {
    %c0 = arith.constant 0 : index
    %0 = memref.load %arg1[%c0] : memref<2xf32, #tpu.memory_space<smem>>
    %c1 = arith.constant 1 : index
    %1 = memref.load %arg1[%c1] : memref<2xf32, #tpu.memory_space<smem>>
    %c0_0 = arith.constant 0 : index
    %c0_1 = arith.constant 0 : index
    %2 = vector.load %arg3[%c0_0, %c0_1] : memref<24x8xf32, #tpu.memory_space<vmem>>, vector<24x8xf32>
    %c0_2 = arith.constant 0 : index
    %c0_3 = arith.constant 0 : index
    %3 = vector.load %arg4[%c0_2, %c0_3] : memref<8x24xf32, #tpu.memory_space<vmem>>, vector<8x24xf32>
    %c0_4 = arith.constant 0 : index
    %c0_5 = arith.constant 0 : index
    %4 = vector.load %arg5[%c0_4, %c0_5] : memref<24x24xf32, #tpu.memory_space<vmem>>, vector<24x24xf32>
    %c0_6 = arith.constant 0 : index
    %c0_7 = arith.constant 0 : index
    %5 = vector.load %arg6[%c0_6, %c0_7] : memref<8x128xf32, #tpu.memory_space<vmem>>, vector<8x128xf32>
    %cst = arith.constant dense<0.000000e+00> : vector<24x128xf32>
    %6 = tpu.matmul %2, %5, %cst {dimension_numbers = #tpu.dot_dimension_numbers<[1], [0], [0], [1], [0, 0, 1, 1], [], []>} : vector<24x8xf32>, vector<8x128xf32>, vector<24x128xf32> -> vector<24x128xf32>
    %cst_8 = arith.constant 0.000000e+00 : f32
    %7 = vector.broadcast %cst_8 : f32 to vector<24x128xf32>
    %c0_i32 = arith.constant 0 : i32
    %false = arith.constant false
    %8:4 = scf.while (%arg9 = %7, %arg10 = %7, %arg11 = %c0_i32, %arg12 = %false) : (vector<24x128xf32>, vector<24x128xf32>, i32, i1) -> (vector<24x128xf32>, vector<24x128xf32>, i32, i1) {
      %c25_i32 = arith.constant 25 : i32
      %12 = arith.cmpi slt, %arg11, %c25_i32 : i32
      %true = arith.constant true
      %13 = arith.xori %arg12, %true : i1
      %14 = arith.andi %12, %13 : i1
      scf.condition(%14) %arg9, %arg10, %arg11, %arg12 : vector<24x128xf32>, vector<24x128xf32>, i32, i1
    } do {
    ^bb0(%arg9: vector<24x128xf32>, %arg10: vector<24x128xf32>, %arg11: i32, %arg12: i1):
      %c4_i32 = arith.constant 4 : i32
      %12 = arith.muli %arg11, %c4_i32 : i32
      %c0_i32_14 = arith.constant 0 : i32
      %13 = arith.addi %12, %c0_i32_14 : i32
      %cst_15 = arith.constant dense<0.000000e+00> : vector<24x128xf32>
      %14 = tpu.matmul %4, %arg10, %cst_15 {dimension_numbers = #tpu.dot_dimension_numbers<[1], [0], [0], [1], [0, 0, 1, 1], [], []>} : vector<24x24xf32>, vector<24x128xf32>, vector<24x128xf32> -> vector<24x128xf32>
      %15 = arith.addf %14, %6 : vector<24x128xf32>
      %16 = vector.broadcast %0 : f32 to vector<24x128xf32>
      %17 = arith.subf %15, %16 : vector<24x128xf32>
      %cst_16 = arith.constant 0.000000e+00 : f32
      %18 = vector.broadcast %cst_16 : f32 to vector<24x128xf32>
      %19 = arith.maximumf %17, %18 : vector<24x128xf32>
      %cst_17 = arith.constant 0.000000e+00 : f32
      %20 = vector.broadcast %cst_17 : f32 to vector<24x128xf32>
      %21 = arith.subf %20, %15 : vector<24x128xf32>
      %22 = vector.broadcast %0 : f32 to vector<24x128xf32>
      %23 = arith.subf %21, %22 : vector<24x128xf32>
      %cst_18 = arith.constant 0.000000e+00 : f32
      %24 = vector.broadcast %cst_18 : f32 to vector<24x128xf32>
      %25 = arith.maximumf %23, %24 : vector<24x128xf32>
      %26 = arith.subf %19, %25 : vector<24x128xf32>
      %27 = arith.index_cast %13 : i32 to index
      %28 = memref.load %arg2[%27] : memref<100xf32, #tpu.memory_space<smem>>
      %29 = arith.subf %26, %arg9 : vector<24x128xf32>
      %30 = vector.broadcast %28 : f32 to vector<24x128xf32>
      %31 = arith.mulf %30, %29 : vector<24x128xf32>
      %32 = arith.addf %26, %31 : vector<24x128xf32>
      %c1_i32 = arith.constant 1 : i32
      %33 = arith.addi %12, %c1_i32 : i32
      %cst_19 = arith.constant dense<0.000000e+00> : vector<24x128xf32>
      %34 = tpu.matmul %4, %32, %cst_19 {dimension_numbers = #tpu.dot_dimension_numbers<[1], [0], [0], [1], [0, 0, 1, 1], [], []>} : vector<24x24xf32>, vector<24x128xf32>, vector<24x128xf32> -> vector<24x128xf32>
      %35 = arith.addf %34, %6 : vector<24x128xf32>
      %36 = vector.broadcast %0 : f32 to vector<24x128xf32>
      %37 = arith.subf %35, %36 : vector<24x128xf32>
      %cst_20 = arith.constant 0.000000e+00 : f32
      %38 = vector.broadcast %cst_20 : f32 to vector<24x128xf32>
      %39 = arith.maximumf %37, %38 : vector<24x128xf32>
      %cst_21 = arith.constant 0.000000e+00 : f32
      %40 = vector.broadcast %cst_21 : f32 to vector<24x128xf32>
      %41 = arith.subf %40, %35 : vector<24x128xf32>
      %42 = vector.broadcast %0 : f32 to vector<24x128xf32>
      %43 = arith.subf %41, %42 : vector<24x128xf32>
      %cst_22 = arith.constant 0.000000e+00 : f32
      %44 = vector.broadcast %cst_22 : f32 to vector<24x128xf32>
      %45 = arith.maximumf %43, %44 : vector<24x128xf32>
      %46 = arith.subf %39, %45 : vector<24x128xf32>
      %47 = arith.index_cast %33 : i32 to index
      %48 = memref.load %arg2[%47] : memref<100xf32, #tpu.memory_space<smem>>
      %49 = arith.subf %46, %26 : vector<24x128xf32>
      %50 = vector.broadcast %48 : f32 to vector<24x128xf32>
      %51 = arith.mulf %50, %49 : vector<24x128xf32>
      %52 = arith.addf %46, %51 : vector<24x128xf32>
      %c2_i32 = arith.constant 2 : i32
      %53 = arith.addi %12, %c2_i32 : i32
      %cst_23 = arith.constant dense<0.000000e+00> : vector<24x128xf32>
      %54 = tpu.matmul %4, %52, %cst_23 {dimension_numbers = #tpu.dot_dimension_numbers<[1], [0], [0], [1], [0, 0, 1, 1], [], []>} : vector<24x24xf32>, vector<24x128xf32>, vector<24x128xf32> -> vector<24x128xf32>
      %55 = arith.addf %54, %6 : vector<24x128xf32>
      %56 = vector.broadcast %0 : f32 to vector<24x128xf32>
      %57 = arith.subf %55, %56 : vector<24x128xf32>
      %cst_24 = arith.constant 0.000000e+00 : f32
      %58 = vector.broadcast %cst_24 : f32 to vector<24x128xf32>
      %59 = arith.maximumf %57, %58 : vector<24x128xf32>
      %cst_25 = arith.constant 0.000000e+00 : f32
      %60 = vector.broadcast %cst_25 : f32 to vector<24x128xf32>
      %61 = arith.subf %60, %55 : vector<24x128xf32>
      %62 = vector.broadcast %0 : f32 to vector<24x128xf32>
      %63 = arith.subf %61, %62 : vector<24x128xf32>
      %cst_26 = arith.constant 0.000000e+00 : f32
      %64 = vector.broadcast %cst_26 : f32 to vector<24x128xf32>
      %65 = arith.maximumf %63, %64 : vector<24x128xf32>
      %66 = arith.subf %59, %65 : vector<24x128xf32>
      %67 = arith.index_cast %53 : i32 to index
      %68 = memref.load %arg2[%67] : memref<100xf32, #tpu.memory_space<smem>>
      %69 = arith.subf %66, %46 : vector<24x128xf32>
      %70 = vector.broadcast %68 : f32 to vector<24x128xf32>
      %71 = arith.mulf %70, %69 : vector<24x128xf32>
      %72 = arith.addf %66, %71 : vector<24x128xf32>
      %c4_i32_27 = arith.constant 4 : i32
      %73 = arith.addi %12, %c4_i32_27 : i32
      %c1_i32_28 = arith.constant 1 : i32
      %74 = arith.subi %73, %c1_i32_28 : i32
      %cst_29 = arith.constant dense<0.000000e+00> : vector<24x128xf32>
      %75 = tpu.matmul %4, %72, %cst_29 {dimension_numbers = #tpu.dot_dimension_numbers<[1], [0], [0], [1], [0, 0, 1, 1], [], []>} : vector<24x24xf32>, vector<24x128xf32>, vector<24x128xf32> -> vector<24x128xf32>
      %76 = arith.addf %75, %6 : vector<24x128xf32>
      %77 = vector.broadcast %0 : f32 to vector<24x128xf32>
      %78 = arith.subf %76, %77 : vector<24x128xf32>
      %cst_30 = arith.constant 0.000000e+00 : f32
      %79 = vector.broadcast %cst_30 : f32 to vector<24x128xf32>
      %80 = arith.maximumf %78, %79 : vector<24x128xf32>
      %cst_31 = arith.constant 0.000000e+00 : f32
      %81 = vector.broadcast %cst_31 : f32 to vector<24x128xf32>
      %82 = arith.subf %81, %76 : vector<24x128xf32>
      %83 = vector.broadcast %0 : f32 to vector<24x128xf32>
      %84 = arith.subf %82, %83 : vector<24x128xf32>
      %cst_32 = arith.constant 0.000000e+00 : f32
      %85 = vector.broadcast %cst_32 : f32 to vector<24x128xf32>
      %86 = arith.maximumf %84, %85 : vector<24x128xf32>
      %87 = arith.subf %80, %86 : vector<24x128xf32>
      %88 = arith.index_cast %74 : i32 to index
      %89 = memref.load %arg2[%88] : memref<100xf32, #tpu.memory_space<smem>>
      %90 = arith.subf %87, %66 : vector<24x128xf32>
      %91 = vector.broadcast %89 : f32 to vector<24x128xf32>
      %92 = arith.mulf %91, %90 : vector<24x128xf32>
      %93 = arith.addf %87, %92 : vector<24x128xf32>
      %94 = arith.subf %66, %87 : vector<24x128xf32>
      %95 = arith.mulf %94, %94 : vector<24x128xf32>
      %96 = vector.shape_cast %95 : vector<24x128xf32> to vector<1x24x128xf32>
      %cst_33 = arith.constant dense<0.000000e+00> : vector<1xf32>
      %97 = vector.multi_reduction <add>, %96, %cst_33 [1, 2] : vector<1x24x128xf32> to vector<1xf32>
      %98 = vector.shape_cast %97 : vector<1xf32> to vector<1x1x1xf32>
      %99 = vector.extract %98[0, 0, 0] : f32 from vector<1x1x1xf32>
      %c1_i32_34 = arith.constant 1 : i32
      %100 = arith.addi %arg11, %c1_i32_34 : i32
      %101 = arith.cmpf olt, %99, %1 : f32
      scf.yield %87, %93, %100, %101 : vector<24x128xf32>, vector<24x128xf32>, i32, i1
    }
    %c0_9 = arith.constant 0 : index
    %c0_10 = arith.constant 0 : index
    %9 = vector.load %arg7[%c0_9, %c0_10] : memref<24x128xf32, #tpu.memory_space<vmem>>, vector<24x128xf32>
    tpu.vector_store %arg7[%c0_9, %c0_10], %8#0 {strides = array<i32>} : memref<24x128xf32, #tpu.memory_space<vmem>>, vector<24x128xf32>,
    %cst_11 = arith.constant dense<0.000000e+00> : vector<8x128xf32>
    %10 = tpu.matmul %3, %8#0, %cst_11 {dimension_numbers = #tpu.dot_dimension_numbers<[1], [0], [0], [1], [0, 0, 1, 1], [], []>} : vector<8x24xf32>, vector<24x128xf32>, vector<8x128xf32> -> vector<8x128xf32>
    %c0_12 = arith.constant 0 : index
    %c0_13 = arith.constant 0 : index
    %11 = vector.load %arg8[%c0_12, %c0_13] : memref<8x128xf32, #tpu.memory_space<vmem>>, vector<8x128xf32>
    tpu.vector_store %arg8[%c0_12, %c0_13], %10 {strides = array<i32>} : memref<8x128xf32, #tpu.memory_space<vmem>>, vector<8x128xf32>,
    return
  }
  func.func @transform_0(%arg0: i32) -> i32 {
    %c0_i32 = arith.constant 0 : i32
    %c0_i32_0 = arith.constant 0 : i32
    return %c0_i32 : i32
  }
  func.func @transform_1(%arg0: i32) -> i32 {
    %c0_i32 = arith.constant 0 : i32
    %c0_i32_0 = arith.constant 0 : i32
    return %c0_i32 : i32
  }
  func.func @transform_2(%arg0: i32) -> (i32, i32) {
    %c0_i32 = arith.constant 0 : i32
    %c0_i32_0 = arith.constant 0 : i32
    %c0_i32_1 = arith.constant 0 : i32
    return %c0_i32, %c0_i32_0 : i32, i32
  }
  func.func @transform_3(%arg0: i32) -> (i32, i32) {
    %c0_i32 = arith.constant 0 : i32
    %c0_i32_0 = arith.constant 0 : i32
    %c0_i32_1 = arith.constant 0 : i32
    return %c0_i32, %c0_i32_0 : i32, i32
  }
  func.func @transform_4(%arg0: i32) -> (i32, i32) {
    %c0_i32 = arith.constant 0 : i32
    %c0_i32_0 = arith.constant 0 : i32
    %c0_i32_1 = arith.constant 0 : i32
    return %c0_i32, %c0_i32_0 : i32, i32
  }
  func.func @transform_5(%arg0: i32) -> (i32, i32) {
    %c0_i32 = arith.constant 0 : i32
    %c0_i32_0 = arith.constant 0 : i32
    return %c0_i32, %arg0 : i32, i32
  }
  func.func @transform_6(%arg0: i32) -> (i32, i32) {
    %c0_i32 = arith.constant 0 : i32
    %c0_i32_0 = arith.constant 0 : i32
    return %c0_i32, %arg0 : i32, i32
  }
  func.func @transform_7(%arg0: i32) -> (i32, i32) {
    %c0_i32 = arith.constant 0 : i32
    %c0_i32_0 = arith.constant 0 : i32
    return %c0_i32, %arg0 : i32, i32
  }
}

</mosaic_0001>

<llo_original>
// kernel: tpu_custom_call.1
$region0: #{tpu_custom_call.1}
  #allocation0 [shape = 'u32[]', space=smem, size = 0x4, offset = 0x4, fixed_abs, tag = 'smem constant byte address 0x4 - core index']
  #allocation1 [shape = 'u32[144,128]{1,0:T(1,128)}', space=vmem, size = 0x12000, scoped, tag = 'internal scratch']
  %s0 = inlined_call_operand.vmem [shape: f32[2], index: 0, kind: input, shape index: {}]
  %s1 = inlined_call_operand.hbm [shape: f32[100], index: 1, kind: input, shape index: {}]
  %s2 = inlined_call_operand.vmem [shape: f32[24,8], index: 2, kind: input, shape index: {}]
  %s3 = inlined_call_operand.vmem [shape: f32[8,24], index: 3, kind: input, shape index: {}]
  %s4 = inlined_call_operand.vmem [shape: f32[24,24], index: 4, kind: input, shape index: {}]
  %s5 = inlined_call_operand.vmem [shape: f32[8,128], index: 5, kind: input, shape index: {}]
  %s6 = inlined_call_operand.hbm [shape: f32[24,128], index: 6, kind: output, shape index: {0}]
  %s7 = inlined_call_operand.hbm [shape: f32[8,128], index: 7, kind: output, shape index: {1}]
  %8 = xla_tuple %s6, %s7
  %s9 = sld [smem:[#allocation0]]
  $region57: #{tpu_custom_call.1} parent=0
    _
  %s11 = ssub.s32 1, %s9
  %s12 = scalar_select 0, %s11, %s9
  $region1: #{tpu_custom_call.1} parent=0
    #allocation2 [shape = 'u8[512]{0}', space=smem, size = 0x200, scoped, tag = 'input window, operand 0, single buffered']
    #allocation3 [shape = 's32[1]{0}', space=sflag, size = 0x4, scoped, tag = 'scoped memory for tpu_custom_call.1']
    #allocation4 [shape = 's32[1]{0}', space=sflag, size = 0x4, scoped, tag = 'scoped memory for tpu_custom_call.1']
    #allocation5 [shape = 's32[1]{0}', space=sflag, size = 0x4, scoped, tag = 'scoped memory for tpu_custom_call.1']
    #allocation6 [shape = 'u8[512]{0}', space=smem, size = 0x200, scoped, tag = 'input window, operand 1, single buffered']
    #allocation7 [shape = 'u8[12288]{0}', space=vmem, size = 0x3000, scoped, tag = 'output window, operand 0, single buffered']
    #allocation8 [shape = 'u8[4096]{0}', space=vmem, size = 0x1000, scoped, tag = 'output window, operand 1, single buffered']
    #allocation9 [shape = 's32[1]{0}', space=sflag, size = 0x4, scoped, tag = 'scoped memory for tpu_custom_call.1']
    %13 = vsyncpa [#allocation5], 0
    %14 = vsyncpa [#allocation4], 0
    %15 = vsyncpa [#allocation3], 0
    %16 = vsyncpa [#allocation9], 0
    // Predicated region
    $region2: #{tpu_custom_call.1} parent=1 // pred_check
      _
    $region3: #{tpu_custom_call.1} parent=1 // pred_check_branch
      %18 = sbr.rel (0) target = $region5
    $region4: #{tpu_custom_call.1} parent=1 // pred_region
      %s20 = ssub.s32 16, 16
      %21 = vsyncadd [#allocation5], %s20
      %s23 = sshll.u32 %s0, 4
      %s24 = int_to_ptr.vmem [resolvable:$true] %s23
      %26 = dma.vmem_to_smem %s24, 16, [#allocation2], [#allocation5]
    $region5: #{tpu_custom_call.1} parent=1 // pred_fallthru
      _
    // Predicated region
    $region6: #{tpu_custom_call.1} parent=1 // pred_check
      _
    $region7: #{tpu_custom_call.1} parent=1 // pred_check_branch
      %28 = sbr.rel (0) target = $region9
    $region8: #{tpu_custom_call.1} parent=1 // pred_region
      %s30 = ssub.s32 16, 16
      %31 = vsyncadd [#allocation4], %s30
      %34 = dma.hbm_to_smem %s1, 16, [#allocation6], [#allocation4]
    $region9: #{tpu_custom_call.1} parent=1 // pred_fallthru
      _
    // Predicated region
    $region10: #{tpu_custom_call.1} parent=1 // pred_check
      _
    $region11: #{tpu_custom_call.1} parent=1 // pred_check_branch
      %36 = sbr.rel (0) target = $region13
    $region12: #{tpu_custom_call.1} parent=1 // pred_region
      _
    $region13: #{tpu_custom_call.1} parent=1 // pred_fallthru
      _
    // Predicated region
    $region14: #{tpu_custom_call.1} parent=1 // pred_check
      _
    $region15: #{tpu_custom_call.1} parent=1 // pred_check_branch
      %38 = sbr.rel (0) target = $region17
    $region16: #{tpu_custom_call.1} parent=1 // pred_region
      _
    $region17: #{tpu_custom_call.1} parent=1 // pred_fallthru
      _
    // Predicated region
    $region18: #{tpu_custom_call.1} parent=1 // pred_check
      _
    $region19: #{tpu_custom_call.1} parent=1 // pred_check_branch
      %40 = sbr.rel (0) target = $region21
    $region20: #{tpu_custom_call.1} parent=1 // pred_region
      _
    $region21: #{tpu_custom_call.1} parent=1 // pred_fallthru
      _
    // Predicated region
    $region22: #{tpu_custom_call.1} parent=1 // pred_check
      _
    $region23: #{tpu_custom_call.1} parent=1 // pred_check_branch
      %42 = sbr.rel (0) target = $region25
    $region24: #{tpu_custom_call.1} parent=1 // pred_region
      _
    $region25: #{tpu_custom_call.1} parent=1 // pred_fallthru
      _
    // Predicated region
    $region26: #{tpu_custom_call.1} parent=1 // pred_check
      _
    $region27: #{tpu_custom_call.1} parent=1 // pred_check_branch
      %44 = sbr.rel (0) target = $region29
    $region28: #{tpu_custom_call.1} parent=1 // pred_region
      %45 = dma.done [#allocation5], 16
    $region29: #{tpu_custom_call.1} parent=1 // pred_fallthru
      _
    // Predicated region
    $region30: #{tpu_custom_call.1} parent=1 // pred_check
      _
    $region31: #{tpu_custom_call.1} parent=1 // pred_check_branch
      %47 = sbr.rel (0) target = $region33
    $region32: #{tpu_custom_call.1} parent=1 // pred_region
      %48 = dma.done [#allocation4], 16
    $region33: #{tpu_custom_call.1} parent=1 // pred_fallthru
      _
    %49 = sfence
    %s50 = sld [smem:[#allocation2]]
    %s51 = sld [smem:[#allocation2 + $0x1]]
    %v52 = vld [vmem:[%s2] sm:$0xff]
    %v53 = vld [vmem:[%s2 + $0x8] sm:$0xff]
    %v54 = vld [vmem:[%s2 + $0x10] sm:$0xff]
    %v55 = vld [vmem:[%s3] sm:$0xff]
    %v56 = vld [vmem:[%s4] sm:$0xff]
    %v57 = vld [vmem:[%s4 + $0x8] sm:$0xff]
    %v58 = vld [vmem:[%s4 + $0x10] sm:$0xff]
    %v59 = vld [vmem:[%s5] sm:$0xff]
    %vm60 = vcmask 64512
    %v62 = vsel %vm60, %v52, 0
    %v65 = vsel %vm60, %v53, 0
    %v68 = vsel %vm60, %v54, 0
    %70 = vmatprep.subr.mxu0 0.0
    %71 = vmatpush1.msra.mxu0 0.0
    %72 = vmatprep.subr.mxu0 0.0
    %73 = vmatpush1.msra.mxu0 0.0
    %74 = vmatprep.subr.mxu0 0.0
    %75 = vmatpush1.msra.mxu0 0.0
    %76 = vmatprep.subr.mxu0 0.0
    %77 = vmatpush1.msra.mxu0 0.0
    %78 = vmatprep.subr.mxu0 0.0
    %79 = vmatpush1.msra.mxu0 0.0
    %80 = vmatprep.subr.mxu0 0.0
    %81 = vmatpush1.msra.mxu0 0.0
    %82 = vmatprep.subr.mxu0 0.0
    %83 = vmatpush1.msra.mxu0 0.0
    %84 = vmatprep.subr.mxu0 0.0
    %85 = vmatpush1.msra.mxu0 0.0
    %86 = vmatprep.subr.mxu0 0.0
    %87 = vmatpush1.msra.mxu0 0.0
    %88 = vmatprep.subr.mxu0 0.0
    %89 = vmatpush1.msra.mxu0 0.0
    %90 = vmatprep.subr.mxu0 0.0
    %91 = vmatpush1.msra.mxu0 0.0
    %92 = vmatprep.subr.mxu0 0.0
    %93 = vmatpush1.msra.mxu0 0.0
    %94 = vmatprep.subr.mxu0 0.0
    %95 = vmatpush1.msra.mxu0 0.0
    %96 = vmatprep.subr.mxu0 0.0
    %97 = vmatpush1.msra.mxu0 0.0
    %98 = vmatprep.subr.mxu0 0.0
    %99 = vmatpush1.msra.mxu0 0.0
    %100 = vmatprep.subr.mxu0 0.0
    %101 = vmatpush1.msra.mxu0 %v59
    %102 = vmatprep.subr.mxu0 0.0
    %103 = vmatpush2.msra.mxu0 0.0
    %104 = vmatprep.subr.mxu0 0.0
    %105 = vmatpush2.msra.mxu0 0.0
    %106 = vmatprep.subr.mxu0 0.0
    %107 = vmatpush2.msra.mxu0 0.0
    %108 = vmatprep.subr.mxu0 0.0
    %109 = vmatpush2.msra.mxu0 0.0
    %110 = vmatprep.subr.mxu0 0.0
    %111 = vmatpush2.msra.mxu0 0.0
    %112 = vmatprep.subr.mxu0 0.0
    %113 = vmatpush2.msra.mxu0 0.0
    %114 = vmatprep.subr.mxu0 0.0
    %115 = vmatpush2.msra.mxu0 0.0
    %116 = vmatprep.subr.mxu0 0.0
    %117 = vmatpush2.msra.mxu0 0.0
    %118 = vmatprep.subr.mxu0 0.0
    %119 = vmatpush2.msra.mxu0 0.0
    %120 = vmatprep.subr.mxu0 0.0
    %121 = vmatpush2.msra.mxu0 0.0
    %122 = vmatprep.subr.mxu0 0.0
    %123 = vmatpush2.msra.mxu0 0.0
    %124 = vmatprep.subr.mxu0 0.0
    %125 = vmatpush2.msra.mxu0 0.0
    %126 = vmatprep.subr.mxu0 0.0
    %127 = vmatpush2.msra.mxu0 0.0
    %128 = vmatprep.subr.mxu0 0.0
    %129 = vmatpush2.msra.mxu0 0.0
    %130 = vmatprep.subr.mxu0 0.0
    %131 = vmatpush2.msra.mxu0 0.0
    %132 = vmatprep.subr.mxu0 0.0
    %133 = vmatpush2.msra.mxu0 0.0
    %134 = vmatprep.mubr.f32.mxu0 0.0
    %135 = vmatmul.mubr.f32.gmra.mxu0 %v62
    %v136 = vpop.f32.mrf.mxu0
    %v137 = vadd.f32 0.0, %v136
    %v138 = vpop.f32.mrf.mxu0
    %139 = vmatprep.mubr.f32.mxu0 0.0
    %140 = vmatmul.mubr.f32.gmra.mxu0 %v65
    %v141 = vpop.f32.mrf.mxu0
    %v142 = vadd.f32 0.0, %v141
    %v143 = vpop.f32.mrf.mxu0
    %144 = vmatprep.mubr.f32.mxu0 0.0
    %145 = vmatmul.mubr.f32.gmra.mxu0 %v68
    %v146 = vpop.f32.mrf.mxu0
    %v147 = vadd.f32 0.0, %v146
    %v148 = vpop.f32.mrf.mxu0
    %149 = vdwg.mxu0
    // While loop
    $region34: #{tpu_custom_call.1} parent=1 // loop_pre_header
      _
    $region35: #{tpu_custom_call.1} parent=1 // loop_header
      %v151 = vphi 0.0, %v602
      %v152 = vphi 0.0, %v603
      %v153 = vphi 0.0, %v604
      %v154 = vphi 0.0, %v613
      %v155 = vphi 0.0, %v614
      %v156 = vphi 0.0, %v615
      %s157 = sphi 0, %s633
      %p158 = pphi 0, %p634
      %p159 = scmp.lt.s32.totalorder %s157, 25
      %p160 = pneg %p158
      %p161 = pnand %p159, %p160
      %p162 = pneg %p161
    $region36: #{tpu_custom_call.1} parent=1 // loop_header_branch
      %164 = sbr.rel (%p161) target = $region40
    $region37: #{tpu_custom_call.1} parent=1 // loop_body
      %s165 = smul.u32 %s157, 4
      %vm166 = vcmask 195584
      %v168 = vsel %vm166, %v56, 0
      %v171 = vsel %vm166, %v57, 0
      %v174 = vsel %vm166, %v58, 0
      %176 = vmatprep.subr.mxu0 0.0
      %177 = vmatpush1.msra.mxu0 0.0
      %178 = vmatprep.subr.mxu0 0.0
      %179 = vmatpush1.msra.mxu0 0.0
      %180 = vmatprep.subr.mxu0 0.0
      %181 = vmatpush1.msra.mxu0 0.0
      %182 = vmatprep.subr.mxu0 0.0
      %183 = vmatpush1.msra.mxu0 0.0
      %184 = vmatprep.subr.mxu0 0.0
      %185 = vmatpush1.msra.mxu0 0.0
      %186 = vmatprep.subr.mxu0 0.0
      %187 = vmatpush1.msra.mxu0 0.0
      %188 = vmatprep.subr.mxu0 0.0
      %189 = vmatpush1.msra.mxu0 0.0
      %190 = vmatprep.subr.mxu0 0.0
      %191 = vmatpush1.msra.mxu0 0.0
      %192 = vmatprep.subr.mxu0 0.0
      %193 = vmatpush1.msra.mxu0 0.0
      %194 = vmatprep.subr.mxu0 0.0
      %195 = vmatpush1.msra.mxu0 0.0
      %196 = vmatprep.subr.mxu0 0.0
      %197 = vmatpush1.msra.mxu0 0.0
      %198 = vmatprep.subr.mxu0 0.0
      %199 = vmatpush1.msra.mxu0 0.0
      %200 = vmatprep.subr.mxu0 0.0
      %201 = vmatpush1.msra.mxu0 0.0
      %202 = vmatprep.subr.mxu0 0.0
      %203 = vmatpush1.msra.mxu0 %v156
      %204 = vmatprep.subr.mxu0 0.0
      %205 = vmatpush1.msra.mxu0 %v155
      %206 = vmatprep.subr.mxu0 0.0
      %207 = vmatpush1.msra.mxu0 %v154
      %208 = vmatprep.subr.mxu0 0.0
      %209 = vmatpush2.msra.mxu0 0.0
      %210 = vmatprep.subr.mxu0 0.0
      %211 = vmatpush2.msra.mxu0 0.0
      %212 = vmatprep.subr.mxu0 0.0
      %213 = vmatpush2.msra.mxu0 0.0
      %214 = vmatprep.subr.mxu0 0.0
      %215 = vmatpush2.msra.mxu0 0.0
      %216 = vmatprep.subr.mxu0 0.0
      %217 = vmatpush2.msra.mxu0 0.0
      %218 = vmatprep.subr.mxu0 0.0
      %219 = vmatpush2.msra.mxu0 0.0
      %220 = vmatprep.subr.mxu0 0.0
      %221 = vmatpush2.msra.mxu0 0.0
      %222 = vmatprep.subr.mxu0 0.0
      %223 = vmatpush2.msra.mxu0 0.0
      %224 = vmatprep.subr.mxu0 0.0
      %225 = vmatpush2.msra.mxu0 0.0
      %226 = vmatprep.subr.mxu0 0.0
      %227 = vmatpush2.msra.mxu0 0.0
      %228 = vmatprep.subr.mxu0 0.0
      %229 = vmatpush2.msra.mxu0 0.0
      %230 = vmatprep.subr.mxu0 0.0
      %231 = vmatpush2.msra.mxu0 0.0
      %232 = vmatprep.subr.mxu0 0.0
      %233 = vmatpush2.msra.mxu0 0.0
      %234 = vmatprep.subr.mxu0 0.0
      %235 = vmatpush2.msra.mxu0 0.0
      %236 = vmatprep.subr.mxu0 0.0
      %237 = vmatpush2.msra.mxu0 0.0
      %238 = vmatprep.subr.mxu0 0.0
      %239 = vmatpush2.msra.mxu0 0.0
      %240 = vmatprep.mubr.f32.mxu0 0.0
      %241 = vmatmul.mubr.f32.gmra.mxu0 %v168
      %v242 = vpop.f32.mrf.mxu0
      %v243 = vadd.f32 %v137, %v242
      %v244 = vpop.f32.mrf.mxu0
      %245 = vmatprep.mubr.f32.mxu0 0.0
      %246 = vmatmul.mubr.f32.gmra.mxu0 %v171
      %v247 = vpop.f32.mrf.mxu0
      %v248 = vadd.f32 %v142, %v247
      %v249 = vpop.f32.mrf.mxu0
      %250 = vmatprep.mubr.f32.mxu0 0.0
      %251 = vmatmul.mubr.f32.gmra.mxu0 %v174
      %v252 = vpop.f32.mrf.mxu0
      %v253 = vadd.f32 %v147, %v252
      %v254 = vpop.f32.mrf.mxu0
      %255 = vdwg.mxu0
      %v256 = vstv %s50
      %v257 = vsub.f32 %v243, %v256
      %v258 = vsub.f32 %v248, %v256
      %v259 = vsub.f32 %v253, %v256
      %v260 = vmax.f32 %v257, 0.0
      %v261 = vmax.f32 %v258, 0.0
      %v262 = vmax.f32 %v259, 0.0
      %v263 = vsub.f32 0.0, %v243
      %v264 = vsub.f32 0.0, %v248
      %v265 = vsub.f32 0.0, %v253
      %v266 = vsub.f32 %v263, %v256
      %v267 = vsub.f32 %v264, %v256
      %v268 = vsub.f32 %v265, %v256
      %v269 = vmax.f32 %v266, 0.0
      %v270 = vmax.f32 %v267, 0.0
      %v271 = vmax.f32 %v268, 0.0
      %v272 = vsub.f32 %v260, %v269
      %v273 = vsub.f32 %v261, %v270
      %v274 = vsub.f32 %v262, %v271
      %s275 = sld [smem:[#allocation6 + %s165]]
      %v276 = vsub.f32 %v272, %v151
      %v277 = vsub.f32 %v273, %v152
      %v278 = vsub.f32 %v274, %v153
      %v279 = vstv %s275
      %v280 = vmul.f32 %v279, %v276
      %v281 = vmul.f32 %v279, %v277
      %v282 = vmul.f32 %v279, %v278
      %v283 = vadd.f32 %v272, %v280
      %v284 = vadd.f32 %v273, %v281
      %v285 = vadd.f32 %v274, %v282
      %s286 = sadd.s32 %s165, 1
      %287 = vmatprep.subr.mxu0 0.0
      %288 = vmatpush1.msra.mxu0 0.0
      %289 = vmatprep.subr.mxu0 0.0
      %290 = vmatpush1.msra.mxu0 0.0
      %291 = vmatprep.subr.mxu0 0.0
      %292 = vmatpush1.msra.mxu0 0.0
      %293 = vmatprep.subr.mxu0 0.0
      %294 = vmatpush1.msra.mxu0 0.0
      %295 = vmatprep.subr.mxu0 0.0
      %296 = vmatpush1.msra.mxu0 0.0
      %297 = vmatprep.subr.mxu0 0.0
      %298 = vmatpush1.msra.mxu0 0.0
      %299 = vmatprep.subr.mxu0 0.0
      %300 = vmatpush1.msra.mxu0 0.0
      %301 = vmatprep.subr.mxu0 0.0
      %302 = vmatpush1.msra.mxu0 0.0
      %303 = vmatprep.subr.mxu0 0.0
      %304 = vmatpush1.msra.mxu0 0.0
      %305 = vmatprep.subr.mxu0 0.0
      %306 = vmatpush1.msra.mxu0 0.0
      %307 = vmatprep.subr.mxu0 0.0
      %308 = vmatpush1.msra.mxu0 0.0
      %309 = vmatprep.subr.mxu0 0.0
      %310 = vmatpush1.msra.mxu0 0.0
      %311 = vmatprep.subr.mxu0 0.0
      %312 = vmatpush1.msra.mxu0 0.0
      %313 = vmatprep.subr.mxu0 0.0
      %314 = vmatpush1.msra.mxu0 %v285
      %315 = vmatprep.subr.mxu0 0.0
      %316 = vmatpush1.msra.mxu0 %v284
      %317 = vmatprep.subr.mxu0 0.0
      %318 = vmatpush1.msra.mxu0 %v283
      %319 = vmatprep.subr.mxu0 0.0
      %320 = vmatpush2.msra.mxu0 0.0
      %321 = vmatprep.subr.mxu0 0.0
      %322 = vmatpush2.msra.mxu0 0.0
      %323 = vmatprep.subr.mxu0 0.0
      %324 = vmatpush2.msra.mxu0 0.0
      %325 = vmatprep.subr.mxu0 0.0
      %326 = vmatpush2.msra.mxu0 0.0
      %327 = vmatprep.subr.mxu0 0.0
      %328 = vmatpush2.msra.mxu0 0.0
      %329 = vmatprep.subr.mxu0 0.0
      %330 = vmatpush2.msra.mxu0 0.0
      %331 = vmatprep.subr.mxu0 0.0
      %332 = vmatpush2.msra.mxu0 0.0
      %333 = vmatprep.subr.mxu0 0.0
      %334 = vmatpush2.msra.mxu0 0.0
      %335 = vmatprep.subr.mxu0 0.0
      %336 = vmatpush2.msra.mxu0 0.0
      %337 = vmatprep.subr.mxu0 0.0
      %338 = vmatpush2.msra.mxu0 0.0
      %339 = vmatprep.subr.mxu0 0.0
      %340 = vmatpush2.msra.mxu0 0.0
      %341 = vmatprep.subr.mxu0 0.0
      %342 = vmatpush2.msra.mxu0 0.0
      %343 = vmatprep.subr.mxu0 0.0
      %344 = vmatpush2.msra.mxu0 0.0
      %345 = vmatprep.subr.mxu0 0.0
      %346 = vmatpush2.msra.mxu0 0.0
      %347 = vmatprep.subr.mxu0 0.0
      %348 = vmatpush2.msra.mxu0 0.0
      %349 = vmatprep.subr.mxu0 0.0
      %350 = vmatpush2.msra.mxu0 0.0
      %351 = vmatprep.mubr.f32.mxu0 0.0
      %352 = vmatmul.mubr.f32.gmra.mxu0 %v168
      %v353 = vpop.f32.mrf.mxu0
      %v354 = vadd.f32 %v137, %v353
      %v355 = vpop.f32.mrf.mxu0
      %356 = vmatprep.mubr.f32.mxu0 0.0
      %357 = vmatmul.mubr.f32.gmra.mxu0 %v171
      %v358 = vpop.f32.mrf.mxu0
      %v359 = vadd.f32 %v142, %v358
      %v360 = vpop.f32.mrf.mxu0
      %361 = vmatprep.mubr.f32.mxu0 0.0
      %362 = vmatmul.mubr.f32.gmra.mxu0 %v174
      %v363 = vpop.f32.mrf.mxu0
      %v364 = vadd.f32 %v147, %v363
      %v365 = vpop.f32.mrf.mxu0
      %366 = vdwg.mxu0
      %v367 = vsub.f32 %v354, %v256
      %v368 = vsub.f32 %v359, %v256
      %v369 = vsub.f32 %v364, %v256
      %v370 = vmax.f32 %v367, 0.0
      %v371 = vmax.f32 %v368, 0.0
      %v372 = vmax.f32 %v369, 0.0
      %v373 = vsub.f32 0.0, %v354
      %v374 = vsub.f32 0.0, %v359
      %v375 = vsub.f32 0.0, %v364
      %v376 = vsub.f32 %v373, %v256
      %v377 = vsub.f32 %v374, %v256
      %v378 = vsub.f32 %v375, %v256
      %v379 = vmax.f32 %v376, 0.0
      %v380 = vmax.f32 %v377, 0.0
      %v381 = vmax.f32 %v378, 0.0
      %v382 = vsub.f32 %v370, %v379
      %v383 = vsub.f32 %v371, %v380
      %v384 = vsub.f32 %v372, %v381
      %s385 = sld [smem:[#allocation6 + %s286]]
      %v386 = vsub.f32 %v382, %v272
      %v387 = vsub.f32 %v383, %v273
      %v388 = vsub.f32 %v384, %v274
      %v389 = vstv %s385
      %v390 = vmul.f32 %v389, %v386
      %v391 = vmul.f32 %v389, %v387
      %v392 = vmul.f32 %v389, %v388
      %v393 = vadd.f32 %v382, %v390
      %v394 = vadd.f32 %v383, %v391
      %v395 = vadd.f32 %v384, %v392
      %s396 = sadd.s32 %s165, 2
      %397 = vmatprep.subr.mxu0 0.0
      %398 = vmatpush1.msra.mxu0 0.0
      %399 = vmatprep.subr.mxu0 0.0
      %400 = vmatpush1.msra.mxu0 0.0
      %401 = vmatprep.subr.mxu0 0.0
      %402 = vmatpush1.msra.mxu0 0.0
      %403 = vmatprep.subr.mxu0 0.0
      %404 = vmatpush1.msra.mxu0 0.0
      %405 = vmatprep.subr.mxu0 0.0
      %406 = vmatpush1.msra.mxu0 0.0
      %407 = vmatprep.subr.mxu0 0.0
      %408 = vmatpush1.msra.mxu0 0.0
      %409 = vmatprep.subr.mxu0 0.0
      %410 = vmatpush1.msra.mxu0 0.0
      %411 = vmatprep.subr.mxu0 0.0
      %412 = vmatpush1.msra.mxu0 0.0
      %413 = vmatprep.subr.mxu0 0.0
      %414 = vmatpush1.msra.mxu0 0.0
      %415 = vmatprep.subr.mxu0 0.0
      %416 = vmatpush1.msra.mxu0 0.0
      %417 = vmatprep.subr.mxu0 0.0
      %418 = vmatpush1.msra.mxu0 0.0
      %419 = vmatprep.subr.mxu0 0.0
      %420 = vmatpush1.msra.mxu0 0.0
      %421 = vmatprep.subr.mxu0 0.0
      %422 = vmatpush1.msra.mxu0 0.0
      %423 = vmatprep.subr.mxu0 0.0
      %424 = vmatpush1.msra.mxu0 %v395
      %425 = vmatprep.subr.mxu0 0.0
      %426 = vmatpush1.msra.mxu0 %v394
      %427 = vmatprep.subr.mxu0 0.0
      %428 = vmatpush1.msra.mxu0 %v393
      %429 = vmatprep.subr.mxu0 0.0
      %430 = vmatpush2.msra.mxu0 0.0
      %431 = vmatprep.subr.mxu0 0.0
      %432 = vmatpush2.msra.mxu0 0.0
      %433 = vmatprep.subr.mxu0 0.0
      %434 = vmatpush2.msra.mxu0 0.0
      %435 = vmatprep.subr.mxu0 0.0
      %436 = vmatpush2.msra.mxu0 0.0
      %437 = vmatprep.subr.mxu0 0.0
      %438 = vmatpush2.msra.mxu0 0.0
      %439 = vmatprep.subr.mxu0 0.0
      %440 = vmatpush2.msra.mxu0 0.0
      %441 = vmatprep.subr.mxu0 0.0
      %442 = vmatpush2.msra.mxu0 0.0
      %443 = vmatprep.subr.mxu0 0.0
      %444 = vmatpush2.msra.mxu0 0.0
      %445 = vmatprep.subr.mxu0 0.0
      %446 = vmatpush2.msra.mxu0 0.0
      %447 = vmatprep.subr.mxu0 0.0
      %448 = vmatpush2.msra.mxu0 0.0
      %449 = vmatprep.subr.mxu0 0.0
      %450 = vmatpush2.msra.mxu0 0.0
      %451 = vmatprep.subr.mxu0 0.0
      %452 = vmatpush2.msra.mxu0 0.0
      %453 = vmatprep.subr.mxu0 0.0
      %454 = vmatpush2.msra.mxu0 0.0
      %455 = vmatprep.subr.mxu0 0.0
      %456 = vmatpush2.msra.mxu0 0.0
      %457 = vmatprep.subr.mxu0 0.0
      %458 = vmatpush2.msra.mxu0 0.0
      %459 = vmatprep.subr.mxu0 0.0
      %460 = vmatpush2.msra.mxu0 0.0
      %461 = vmatprep.mubr.f32.mxu0 0.0
      %462 = vmatmul.mubr.f32.gmra.mxu0 %v168
      %v463 = vpop.f32.mrf.mxu0
      %v464 = vadd.f32 %v137, %v463
      %v465 = vpop.f32.mrf.mxu0
      %466 = vmatprep.mubr.f32.mxu0 0.0
      %467 = vmatmul.mubr.f32.gmra.mxu0 %v171
      %v468 = vpop.f32.mrf.mxu0
      %v469 = vadd.f32 %v142, %v468
      %v470 = vpop.f32.mrf.mxu0
      %471 = vmatprep.mubr.f32.mxu0 0.0
      %472 = vmatmul.mubr.f32.gmra.mxu0 %v174
      %v473 = vpop.f32.mrf.mxu0
      %v474 = vadd.f32 %v147, %v473
      %v475 = vpop.f32.mrf.mxu0
      %476 = vdwg.mxu0
      %v477 = vsub.f32 %v464, %v256
      %v478 = vsub.f32 %v469, %v256
      %v479 = vsub.f32 %v474, %v256
      %v480 = vmax.f32 %v477, 0.0
      %v481 = vmax.f32 %v478, 0.0
      %v482 = vmax.f32 %v479, 0.0
      %v483 = vsub.f32 0.0, %v464
      %v484 = vsub.f32 0.0, %v469
      %v485 = vsub.f32 0.0, %v474
      %v486 = vsub.f32 %v483, %v256
      %v487 = vsub.f32 %v484, %v256
      %v488 = vsub.f32 %v485, %v256
      %v489 = vmax.f32 %v486, 0.0
      %v490 = vmax.f32 %v487, 0.0
      %v491 = vmax.f32 %v488, 0.0
      %v492 = vsub.f32 %v480, %v489
      %v493 = vsub.f32 %v481, %v490
      %v494 = vsub.f32 %v482, %v491
      %s495 = sld [smem:[#allocation6 + %s396]]
      %v496 = vsub.f32 %v492, %v382
      %v497 = vsub.f32 %v493, %v383
      %v498 = vsub.f32 %v494, %v384
      %v499 = vstv %s495
      %v500 = vmul.f32 %v499, %v496
      %v501 = vmul.f32 %v499, %v497
      %v502 = vmul.f32 %v499, %v498
      %v503 = vadd.f32 %v492, %v500
      %v504 = vadd.f32 %v493, %v501
      %v505 = vadd.f32 %v494, %v502
      %s506 = sadd.s32 %s165, 3
      %507 = vmatprep.subr.mxu0 0.0
      %508 = vmatpush1.msra.mxu0 0.0
      %509 = vmatprep.subr.mxu0 0.0
      %510 = vmatpush1.msra.mxu0 0.0
      %511 = vmatprep.subr.mxu0 0.0
      %512 = vmatpush1.msra.mxu0 0.0
      %513 = vmatprep.subr.mxu0 0.0
      %514 = vmatpush1.msra.mxu0 0.0
      %515 = vmatprep.subr.mxu0 0.0
      %516 = vmatpush1.msra.mxu0 0.0
      %517 = vmatprep.subr.mxu0 0.0
      %518 = vmatpush1.msra.mxu0 0.0
      %519 = vmatprep.subr.mxu0 0.0
      %520 = vmatpush1.msra.mxu0 0.0
      %521 = vmatprep.subr.mxu0 0.0
      %522 = vmatpush1.msra.mxu0 0.0
      %523 = vmatprep.subr.mxu0 0.0
      %524 = vmatpush1.msra.mxu0 0.0
      %525 = vmatprep.subr.mxu0 0.0
      %526 = vmatpush1.msra.mxu0 0.0
      %527 = vmatprep.subr.mxu0 0.0
      %528 = vmatpush1.msra.mxu0 0.0
      %529 = vmatprep.subr.mxu0 0.0
      %530 = vmatpush1.msra.mxu0 0.0
      %531 = vmatprep.subr.mxu0 0.0
      %532 = vmatpush1.msra.mxu0 0.0
      %533 = vmatprep.subr.mxu0 0.0
      %534 = vmatpush1.msra.mxu0 %v505
      %535 = vmatprep.subr.mxu0 0.0
      %536 = vmatpush1.msra.mxu0 %v504
      %537 = vmatprep.subr.mxu0 0.0
      %538 = vmatpush1.msra.mxu0 %v503
      %539 = vmatprep.subr.mxu0 0.0
      %540 = vmatpush2.msra.mxu0 0.0
      %541 = vmatprep.subr.mxu0 0.0
      %542 = vmatpush2.msra.mxu0 0.0
      %543 = vmatprep.subr.mxu0 0.0
      %544 = vmatpush2.msra.mxu0 0.0
      %545 = vmatprep.subr.mxu0 0.0
      %546 = vmatpush2.msra.mxu0 0.0
      %547 = vmatprep.subr.mxu0 0.0
      %548 = vmatpush2.msra.mxu0 0.0
      %549 = vmatprep.subr.mxu0 0.0
      %550 = vmatpush2.msra.mxu0 0.0
      %551 = vmatprep.subr.mxu0 0.0
      %552 = vmatpush2.msra.mxu0 0.0
      %553 = vmatprep.subr.mxu0 0.0
      %554 = vmatpush2.msra.mxu0 0.0
      %555 = vmatprep.subr.mxu0 0.0
      %556 = vmatpush2.msra.mxu0 0.0
      %557 = vmatprep.subr.mxu0 0.0
      %558 = vmatpush2.msra.mxu0 0.0
      %559 = vmatprep.subr.mxu0 0.0
      %560 = vmatpush2.msra.mxu0 0.0
      %561 = vmatprep.subr.mxu0 0.0
      %562 = vmatpush2.msra.mxu0 0.0
      %563 = vmatprep.subr.mxu0 0.0
      %564 = vmatpush2.msra.mxu0 0.0
      %565 = vmatprep.subr.mxu0 0.0
      %566 = vmatpush2.msra.mxu0 0.0
      %567 = vmatprep.subr.mxu0 0.0
      %568 = vmatpush2.msra.mxu0 0.0
      %569 = vmatprep.subr.mxu0 0.0
      %570 = vmatpush2.msra.mxu0 0.0
      %571 = vmatprep.mubr.f32.mxu0 0.0
      %572 = vmatmul.mubr.f32.gmra.mxu0 %v168
      %v573 = vpop.f32.mrf.mxu0
      %v574 = vadd.f32 %v137, %v573
      %v575 = vpop.f32.mrf.mxu0
      %576 = vmatprep.mubr.f32.mxu0 0.0
      %577 = vmatmul.mubr.f32.gmra.mxu0 %v171
      %v578 = vpop.f32.mrf.mxu0
      %v579 = vadd.f32 %v142, %v578
      %v580 = vpop.f32.mrf.mxu0
      %581 = vmatprep.mubr.f32.mxu0 0.0
      %582 = vmatmul.mubr.f32.gmra.mxu0 %v174
      %v583 = vpop.f32.mrf.mxu0
      %v584 = vadd.f32 %v147, %v583
      %v585 = vpop.f32.mrf.mxu0
      %586 = vdwg.mxu0
      %v587 = vsub.f32 %v574, %v256
      %v588 = vsub.f32 %v579, %v256
      %v589 = vsub.f32 %v584, %v256
      %v590 = vmax.f32 %v587, 0.0
      %v591 = vmax.f32 %v588, 0.0
      %v592 = vmax.f32 %v589, 0.0
      %v593 = vsub.f32 0.0, %v574
      %v594 = vsub.f32 0.0, %v579
      %v595 = vsub.f32 0.0, %v584
      %v596 = vsub.f32 %v593, %v256
      %v597 = vsub.f32 %v594, %v256
      %v598 = vsub.f32 %v595, %v256
      %v599 = vmax.f32 %v596, 0.0
      %v600 = vmax.f32 %v597, 0.0
      %v601 = vmax.f32 %v598, 0.0
      %v602 = vsub.f32 %v590, %v599
      %v603 = vsub.f32 %v591, %v600
      %v604 = vsub.f32 %v592, %v601
      %s605 = sld [smem:[#allocation6 + %s506]]
      %v606 = vsub.f32 %v602, %v492
      %v607 = vsub.f32 %v603, %v493
      %v608 = vsub.f32 %v604, %v494
      %v609 = vstv %s605
      %v610 = vmul.f32 %v609, %v606
      %v611 = vmul.f32 %v609, %v607
      %v612 = vmul.f32 %v609, %v608
      %v613 = vadd.f32 %v602, %v610
      %v614 = vadd.f32 %v603, %v611
      %v615 = vadd.f32 %v604, %v612
      %v616 = vsub.f32 %v492, %v602
      %v617 = vsub.f32 %v493, %v603
      %v618 = vsub.f32 %v494, %v604
      %v619 = vmul.f32 %v616, %v616
      %v620 = vmul.f32 %v617, %v617
      %v621 = vmul.f32 %v618, %v618
      %v622 = vadd.f32 %v619, %v620
      %v623 = vadd.f32 %v622, %v621
      %624 = vadd.xlane.f32.xlu0 %v623
      %v625 = vpop.xlane.xlu0 %624
      %v626 = vrot.slane %v625, 4
      %v627 = vadd.f32 %v625, %v626
      %v628 = vrot.slane %v627, 2
      %v629 = vadd.f32 %v627, %v628
      %v630 = vrot.slane %v629, 1
      %v631 = vadd.f32 %v629, %v630
      %s632 = vtos %v631
      %s633 = sadd.s32 %s157, 1
      %p634 = scmp.lt.f32.partialorder %s632, %s51
    $region38: #{tpu_custom_call.1} parent=1 // loop_footer
      _
    $region39: #{tpu_custom_call.1} parent=1 // loop_footer_branch
      %150 = sbr.rel target = $region35
    $region40: #{tpu_custom_call.1} parent=1 // loop_exit
      _
    %635 = vst [vmem:[#allocation7] sm:$0xff] %v151
    %636 = vst [vmem:[#allocation7 + $0x8] sm:$0xff] %v152
    %637 = vst [vmem:[#allocation7 + $0x10] sm:$0xff] %v153
    %vm638 = vcmask 195584
    %v640 = vsel %vm638, %v55, 0
    %642 = vmatprep.subr.mxu0 0.0
    %643 = vmatpush1.msra.mxu0 0.0
    %644 = vmatprep.subr.mxu0 0.0
    %645 = vmatpush1.msra.mxu0 0.0
    %646 = vmatprep.subr.mxu0 0.0
    %647 = vmatpush1.msra.mxu0 0.0
    %648 = vmatprep.subr.mxu0 0.0
    %649 = vmatpush1.msra.mxu0 0.0
    %650 = vmatprep.subr.mxu0 0.0
    %651 = vmatpush1.msra.mxu0 0.0
    %652 = vmatprep.subr.mxu0 0.0
    %653 = vmatpush1.msra.mxu0 0.0
    %654 = vmatprep.subr.mxu0 0.0
    %655 = vmatpush1.msra.mxu0 0.0
    %656 = vmatprep.subr.mxu0 0.0
    %657 = vmatpush1.msra.mxu0 0.0
    %658 = vmatprep.subr.mxu0 0.0
    %659 = vmatpush1.msra.mxu0 0.0
    %660 = vmatprep.subr.mxu0 0.0
    %661 = vmatpush1.msra.mxu0 0.0
    %662 = vmatprep.subr.mxu0 0.0
    %663 = vmatpush1.msra.mxu0 0.0
    %664 = vmatprep.subr.mxu0 0.0
    %665 = vmatpush1.msra.mxu0 0.0
    %666 = vmatprep.subr.mxu0 0.0
    %667 = vmatpush1.msra.mxu0 0.0
    %668 = vmatprep.subr.mxu0 0.0
    %669 = vmatpush1.msra.mxu0 %v153
    %670 = vmatprep.subr.mxu0 0.0
    %671 = vmatpush1.msra.mxu0 %v152
    %672 = vmatprep.subr.mxu0 0.0
    %673 = vmatpush1.msra.mxu0 %v151
    %674 = vmatprep.subr.mxu0 0.0
    %675 = vmatpush2.msra.mxu0 0.0
    %676 = vmatprep.subr.mxu0 0.0
    %677 = vmatpush2.msra.mxu0 0.0
    %678 = vmatprep.subr.mxu0 0.0
    %679 = vmatpush2.msra.mxu0 0.0
    %680 = vmatprep.subr.mxu0 0.0
    %681 = vmatpush2.msra.mxu0 0.0
    %682 = vmatprep.subr.mxu0 0.0
    %683 = vmatpush2.msra.mxu0 0.0
    %684 = vmatprep.subr.mxu0 0.0
    %685 = vmatpush2.msra.mxu0 0.0
    %686 = vmatprep.subr.mxu0 0.0
    %687 = vmatpush2.msra.mxu0 0.0
    %688 = vmatprep.subr.mxu0 0.0
    %689 = vmatpush2.msra.mxu0 0.0
    %690 = vmatprep.subr.mxu0 0.0
    %691 = vmatpush2.msra.mxu0 0.0
    %692 = vmatprep.subr.mxu0 0.0
    %693 = vmatpush2.msra.mxu0 0.0
    %694 = vmatprep.subr.mxu0 0.0
    %695 = vmatpush2.msra.mxu0 0.0
    %696 = vmatprep.subr.mxu0 0.0
    %697 = vmatpush2.msra.mxu0 0.0
    %698 = vmatprep.subr.mxu0 0.0
    %699 = vmatpush2.msra.mxu0 0.0
    %700 = vmatprep.subr.mxu0 0.0
    %701 = vmatpush2.msra.mxu0 0.0
    %702 = vmatprep.subr.mxu0 0.0
    %703 = vmatpush2.msra.mxu0 0.0
    %704 = vmatprep.subr.mxu0 0.0
    %705 = vmatpush2.msra.mxu0 0.0
    %706 = vmatprep.mubr.f32.mxu0 0.0
    %707 = vmatmul.mubr.f32.gmra.mxu0 %v640
    %v708 = vpop.f32.mrf.mxu0
    %v709 = vadd.f32 0.0, %v708
    %v710 = vpop.f32.mrf.mxu0
    %711 = vdwg.mxu0
    %712 = vst [vmem:[#allocation8] sm:$0xff] %v709
    // Predicated region
    $region41: #{tpu_custom_call.1} parent=1 // pred_check
      _
    $region42: #{tpu_custom_call.1} parent=1 // pred_check_branch
      %714 = sbr.rel (0) target = $region44
    $region43: #{tpu_custom_call.1} parent=1 // pred_region
      %s716 = ssub.s32 384, 384
      %717 = vsyncadd [#allocation3], %s716
      %s718 = sshll.u32 [#allocation7], 4
      %s719 = int_to_ptr.vmem [resolvable:$true] %s718
      %724 = dma.vmem_to_hbm [thread:$0]  %s719, 384, %s6, [#allocation3], 128, 128, 8
    $region44: #{tpu_custom_call.1} parent=1 // pred_fallthru
      _
    // Predicated region
    $region45: #{tpu_custom_call.1} parent=1 // pred_check
      _
    $region46: #{tpu_custom_call.1} parent=1 // pred_check_branch
      %726 = sbr.rel (0) target = $region48
    $region47: #{tpu_custom_call.1} parent=1 // pred_region
      %s728 = ssub.s32 128, 128
      %729 = vsyncadd [#allocation9], %s728
      %s731 = sshll.u32 [#allocation8], 4
      %s732 = int_to_ptr.vmem [resolvable:$true] %s731
      %734 = dma.vmem_to_hbm [thread:$0]  %s732, 128, %s7, [#allocation9]
    $region48: #{tpu_custom_call.1} parent=1 // pred_fallthru
      _
    // Predicated region
    $region49: #{tpu_custom_call.1} parent=1 // pred_check
      _
    $region50: #{tpu_custom_call.1} parent=1 // pred_check_branch
      %736 = sbr.rel (0) target = $region52
    $region51: #{tpu_custom_call.1} parent=1 // pred_region
      %737 = dma.done [#allocation3], 384
    $region52: #{tpu_custom_call.1} parent=1 // pred_fallthru
      _
    // Predicated region
    $region53: #{tpu_custom_call.1} parent=1 // pred_check
      _
    $region54: #{tpu_custom_call.1} parent=1 // pred_check_branch
      %739 = sbr.rel (0) target = $region56
    $region55: #{tpu_custom_call.1} parent=1 // pred_region
      %740 = dma.done [#allocation9], 128
    $region56: #{tpu_custom_call.1} parent=1 // pred_fallthru
      _
    %741 = vsyncpa [#allocation3], 1
    %742 = vsyncpa [#allocation9], 1
    %743 = vsyncpa [#allocation4], 1
    %744 = vsyncpa [#allocation5], 1

</llo_original>
